<compile_context>
chip_gen: v7x
topology: tpu7x:2x2x1
jax: 0.10.0
libtpu: 0.0.40
codegen_flags: <defaults>
</compile_context>

<pallas_src>
import jax
import jax.numpy as jnp
from jax.experimental import pallas as pl
from jax.experimental.pallas import tpu as pltpu


def _round_up(a, b):
    return (a + b - 1) // b * b


def _over_add(x, gap):
    """Literal JAX translation of torch _over_add: (Bb, C, K, S) -> (Bb, C, T)."""
    Bb, C, K, S = x.shape
    P = K // 2
    xt = jnp.transpose(x, (0, 1, 3, 2)).reshape(Bb, C, -1, K * 2)
    in1 = xt[..., :K].reshape(Bb, C, -1)[:, :, P:]
    in2 = xt[..., K:].reshape(Bb, C, -1)[:, :, :-P]
    out = in1 + in2
    if gap > 0:
        out = out[:, :, :-gap]
    return out


def adder_kernel(alpha_ref, h_ref, w_ref, o_ref):
    # h_ref block: (C, tile) f32; w_ref: (N, C) f32; o_ref block: (N, tile).
    a = alpha_ref[0]                                     # PReLU alpha (SMEM scalar)
    h = h_ref[...]
    h = jnp.where(h >= 0, h, a * h)                      # PReLU in f32 on the VPU
    # 1x1 conv == matmul on the MXU.  f32 operands: the kernel is DMA-bound,
    # so f32 costs nothing and keeps ~1e-6-level accuracy.
    y = jnp.dot(w_ref[...], h, preferred_element_type=jnp.float32)
    o_ref[...] = jnp.maximum(y, 0.0).astype(o_ref.dtype)  # ReLU


def _pick_lane_tile(n):
    # Mem-bound tiling: bigger tiles amortize the ~0.35 us/grid-step overhead
    # (measured: 512-lane tiles ~85% of HBM roofline, 1024/2048 ~86%), and the
    # `n >= 2*t` condition guarantees at least 2 tiles whenever n >= 256 so
    # both v7x TensorCores get work.
    for t in (2048, 1024, 512, 256, 128):
        if n >= 2 * t:
            return t
    return 128


def _compiler_params(dim_sem):
    return pltpu.CompilerParams(
        dimension_semantics=dim_sem,
        # Fuse the _over_add transpose/slice/pad producers into the slab
        # operand (avoids a separate HBM intermediate for the activations).
        allow_input_fusion=[False, True, False],
        # Per-step footprint even at 2048-lane tiles is < 1 MiB double
        # buffered; 8 MiB leaves plenty of headroom without squeezing the
        # surrounding XLA fusions (v7x has only 64 MiB total VMEM).
        vmem_limit_bytes=8 * 1024 * 1024,
    )


def adder_forward(x, gap, M, P, conv_w, prelu_alpha):
    """x: (Bb, C, K, S) f32; conv_w: (N, C) f32; prelu_alpha: (1,) f32."""
    h = _over_add(x, gap)                                # (Bb, C, T)
    Bb, C, T = h.shape
    N = conv_w.shape[0]

    if T % 128 == 0 and T >= 256:
        # Production path: T is lane-aligned -> 2-D grid (batch, T-tiles),
        # output written directly in (Bb, N, T); no wrapper-side un-fold pass.
        tile_t = 128
        for t in (2048, 1024, 512, 256):
            if T % t == 0:
                tile_t = t
                break
        out = pl.pallas_call(
            adder_kernel,
            out_shape=jax.ShapeDtypeStruct((Bb, N, T), x.dtype),
            grid=(Bb, T // tile_t),
            in_specs=[
                pl.BlockSpec(memory_space=pltpu.MemorySpace.SMEM),        # alpha
                pl.BlockSpec((None, C, tile_t), lambda b, t: (b, 0, t)),  # slab
                pl.BlockSpec((N, C), lambda b, t: (0, 0)),                # weight
            ],
            out_specs=pl.BlockSpec((None, N, tile_t), lambda b, t: (b, 0, t)),
            compiler_params=_compiler_params(("parallel", "parallel")),
        )(prelu_alpha, h, conv_w)
        return out.reshape(M, N, P)

    # Small / unaligned T: fold batch into the lane axis so every store is
    # lane-dense (unmasked vst) and the whole forward is a few
    # W(N, C) @ X(C, tile) matmuls.
    lt = Bb * T
    tile_l = _pick_lane_tile(lt)
    L = _round_up(lt, tile_l)
    hf = jnp.transpose(h, (1, 0, 2)).reshape(C, lt)
    # Zero lane padding is safe: PReLU(0) = 0 and ReLU(W @ 0) = 0.
    hf = jnp.pad(hf, ((0, 0), (0, L - lt)))

    out = pl.pallas_call(
        adder_kernel,
        out_shape=jax.ShapeDtypeStruct((N, L), x.dtype),
        grid=(L // tile_l,),
        in_specs=[
            pl.BlockSpec(memory_space=pltpu.MemorySpace.SMEM),    # alpha
            pl.BlockSpec((C, tile_l), lambda i: (0, i)),          # activation slab
            pl.BlockSpec((N, C), lambda i: (0, 0)),               # conv weight
        ],
        out_specs=pl.BlockSpec((N, tile_l), lambda i: (0, i)),
        compiler_params=_compiler_params(("parallel",)),
    )(prelu_alpha, hf, conv_w)

    # Un-fold: drop lane pad, (N, Bb*T) -> (Bb, N, T) -> view(M, N, P).
    out = out[:, :lt].reshape(N, Bb, T)
    out = jnp.transpose(out, (1, 0, 2))
    return out.reshape(M, N, P)


def adder_reference(x, gap, M, P, conv_w, prelu_alpha):
    h = _over_add(x, gap)
    a = prelu_alpha[0]
    h = jnp.where(h >= 0, h, a * h)
    y = jnp.einsum("nc,bct->bnt", conv_w, h)
    return jnp.maximum(y.reshape(M, conv_w.shape[0], P), 0.0)


if __name__ == "__main__":
    # Module config:  Adder(N=16, B=8)
    N_out, C_in = 16, 8

    key = jax.random.PRNGKey(0)
    kx, kw = jax.random.split(key)
    # Deterministic parameter init (no checkpoint):
    #   Conv1d(B, N, 1, bias=False) weight ~ (N, B), kaiming-ish scale.
    conv_w = (jax.random.normal(kw, (N_out, C_in), dtype=jnp.float32)
              / jnp.sqrt(jnp.float32(C_in)))
    #   PReLU default init = 0.25 (single shared parameter).
    prelu_alpha = jnp.array([0.25], dtype=jnp.float32)

    # Two configs: small unaligned T (lane-folded path) and a 128-aligned T
    # (direct-layout path), both checked against the pure-JAX reference.
    configs = [
        # (Bb, K, S, gap)   T = (S//2)*K - K//2 - gap
        (2, 16, 8, 8),      # T = 48
        (2, 16, 34, 8),     # T = 256
    ]

    for Bb, K, S, gap in configs:
        T = (S // 2) * K - (K // 2) - gap
        M, P = Bb, T
        kx, sub = jax.random.split(kx)
        x = jax.random.normal(sub, (Bb, C_in, K, S), dtype=jnp.float32)

        out = jax.block_until_ready(
            adder_forward(x, gap, M, P, conv_w, prelu_alpha))
        ref = adder_reference(x, gap, M, P, conv_w, prelu_alpha)
        assert out.shape == (M, N_out, P)
        # f32 matmul operands -> tight tolerance.
        assert jnp.allclose(out, ref, atol=1e-5, rtol=1e-5), float(
            jnp.max(jnp.abs(out - ref)))

    print("KERNEL_OK")
</pallas_src>

<mosaic_0001>
module attributes {stable_mosaic.version = 11 : i64} {
  func.func @adder_kernel(%arg0: i32, %arg1: memref<1xf32, #tpu.memory_space<smem>>, %arg2: memref<8x128xf32, #tpu.memory_space<vmem>>, %arg3: memref<16x8xf32, #tpu.memory_space<vmem>>, %arg4: memref<16x128xf32, #tpu.memory_space<vmem>>) attributes {dimension_semantics = [#tpu.dimension_semantics<parallel>], iteration_bounds = array<i64: 1>, scalar_prefetch = 0 : i64, scratch_operands = 0 : i64, tpu.core_type = #tpu.core_type<tc>, window_params = [{transform_indices = @transform_0, window_bounds = array<i64: 1>}, {transform_indices = @transform_1, window_bounds = array<i64: 8, 128>}, {pipeline_mode = #tpu.pipeline_mode<synchronous>, transform_indices = @transform_2, window_bounds = array<i64: 16, 8>}, {transform_indices = @transform_3, window_bounds = array<i64: 16, 128>}]} {
    %c0 = arith.constant 0 : index
    %0 = memref.load %arg1[%c0] : memref<1xf32, #tpu.memory_space<smem>>
    %c0_0 = arith.constant 0 : index
    %c0_1 = arith.constant 0 : index
    %1 = vector.load %arg2[%c0_0, %c0_1] : memref<8x128xf32, #tpu.memory_space<vmem>>, vector<8x128xf32>
    %cst = arith.constant 0.000000e+00 : f32
    %2 = vector.broadcast %cst : f32 to vector<8x128xf32>
    %3 = arith.cmpf oge, %1, %2 : vector<8x128xf32>
    %4 = vector.broadcast %0 : f32 to vector<8x128xf32>
    %5 = arith.mulf %4, %1 : vector<8x128xf32>
    %6 = arith.select %3, %1, %5 : vector<8x128xi1>, vector<8x128xf32>
    %c0_2 = arith.constant 0 : index
    %c0_3 = arith.constant 0 : index
    %7 = vector.load %arg3[%c0_2, %c0_3] : memref<16x8xf32, #tpu.memory_space<vmem>>, vector<16x8xf32>
    %cst_4 = arith.constant dense<0.000000e+00> : vector<16x128xf32>
    %8 = tpu.matmul %7, %6, %cst_4 {dimension_numbers = #tpu.dot_dimension_numbers<[1], [0], [0], [1], [0, 0, 1, 1], [], []>} : vector<16x8xf32>, vector<8x128xf32>, vector<16x128xf32> -> vector<16x128xf32>
    %cst_5 = arith.constant 0.000000e+00 : f32
    %9 = vector.broadcast %cst_5 : f32 to vector<16x128xf32>
    %10 = arith.maximumf %8, %9 : vector<16x128xf32>
    %c0_6 = arith.constant 0 : index
    %c0_7 = arith.constant 0 : index
    %11 = vector.load %arg4[%c0_6, %c0_7] : memref<16x128xf32, #tpu.memory_space<vmem>>, vector<16x128xf32>
    tpu.vector_store %arg4[%c0_6, %c0_7], %10 {strides = array<i32>} : memref<16x128xf32, #tpu.memory_space<vmem>>, vector<16x128xf32>,
    return
  }
  func.func @transform_0(%arg0: i32) -> i32 {
    %c0_i32 = arith.constant 0 : i32
    %c0_i32_0 = arith.constant 0 : i32
    return %c0_i32 : i32
  }
  func.func @transform_1(%arg0: i32) -> (i32, i32) {
    %c0_i32 = arith.constant 0 : i32
    %c0_i32_0 = arith.constant 0 : i32
    return %c0_i32, %arg0 : i32, i32
  }
  func.func @transform_2(%arg0: i32) -> (i32, i32) {
    %c0_i32 = arith.constant 0 : i32
    %c0_i32_0 = arith.constant 0 : i32
    %c0_i32_1 = arith.constant 0 : i32
    return %c0_i32, %c0_i32_0 : i32, i32
  }
  func.func @transform_3(%arg0: i32) -> (i32, i32) {
    %c0_i32 = arith.constant 0 : i32
    %c0_i32_0 = arith.constant 0 : i32
    return %c0_i32, %arg0 : i32, i32
  }
}

</mosaic_0001>

<llo_original>
// kernel: tpu_custom_call.1
$region0: #{tpu_custom_call.1}
  #allocation0 [shape = 'u32[]', space=smem, size = 0x4, offset = 0x4, fixed_abs, tag = 'smem constant byte address 0x4 - core index']
  #allocation1 [shape = 'u32[144,128]{1,0:T(1,128)}', space=vmem, size = 0x12000, scoped, tag = 'internal scratch']
  #allocation2 [shape = 'f32[1]{0:T(128)S(6)}', space=smem, size = 0x200, scoped, tag = 'scoped memory for tpu_custom_call.1']
  %s0 = inlined_call_operand.<no memory space> [shape: f32[1], index: 0, kind: input, shape index: {}]
  %s1 = inlined_call_operand.vmem [shape: f32[8,128], index: 1, kind: input, shape index: {}]
  %s2 = inlined_call_operand.vmem [shape: f32[16,8], index: 2, kind: input, shape index: {}]
  %s3 = inlined_call_operand.hbm [shape: f32[16,128], index: 3, kind: output, shape index: {}]
  %s4 = sld [smem:[#allocation0]]
  $region22: #{tpu_custom_call.1} parent=0
    _
  %s6 = ssub.s32 1, %s4
  %s7 = scalar_select 0, %s6, %s4
  %8 = sst [smem:[#allocation2]] %s0
  $region1: #{tpu_custom_call.1} parent=0
    #allocation3 [shape = 'u8[8192]{0}', space=vmem, size = 0x2000, scoped, tag = 'output window, operand 0, single buffered']
    #allocation4 [shape = 's32[1]{0}', space=sflag, size = 0x4, scoped, tag = 'scoped memory for tpu_custom_call.1']
    %9 = vsyncpa [#allocation4], 0
    // Predicated region
    $region2: #{tpu_custom_call.1} parent=1 // pred_check
      _
    $region3: #{tpu_custom_call.1} parent=1 // pred_check_branch
      %11 = sbr.rel (0) target = $region5
    $region4: #{tpu_custom_call.1} parent=1 // pred_region
      _
    $region5: #{tpu_custom_call.1} parent=1 // pred_fallthru
      _
    // Predicated region
    $region6: #{tpu_custom_call.1} parent=1 // pred_check
      _
    $region7: #{tpu_custom_call.1} parent=1 // pred_check_branch
      %13 = sbr.rel (0) target = $region9
    $region8: #{tpu_custom_call.1} parent=1 // pred_region
      _
    $region9: #{tpu_custom_call.1} parent=1 // pred_fallthru
      _
    // Predicated region
    $region10: #{tpu_custom_call.1} parent=1 // pred_check
      _
    $region11: #{tpu_custom_call.1} parent=1 // pred_check_branch
      %15 = sbr.rel (0) target = $region13
    $region12: #{tpu_custom_call.1} parent=1 // pred_region
      _
    $region13: #{tpu_custom_call.1} parent=1 // pred_fallthru
      _
    %s16 = sld [smem:[#allocation2]]
    %v17 = vld [vmem:[%s1] sm:$0xff]
    %vm18 = vcmp.ge.f32.partialorder %v17, 0.0
    %v19 = vstv %s16
    %v20 = vmul.f32 %v19, %v17
    %v21 = vsel %vm18, %v17, %v20
    %v22 = vld [vmem:[%s2] sm:$0xff]
    %v23 = vld [vmem:[%s2 + $0x8] sm:$0xff]
    %vm24 = vcmask 64512
    %v26 = vsel %vm24, %v22, 0
    %v29 = vsel %vm24, %v23, 0
    %31 = vmatprep.subr.mxu0 0.0
    %32 = vmatpush1.msra.mxu0 %v21
    %33 = vmatprep.subr.mxu0 0.0
    %34 = vmatpush1.msra.mxu0 0.0
    %35 = vmatprep.subr.mxu0 0.0
    %36 = vmatpush1.msra.mxu0 0.0
    %37 = vmatprep.subr.mxu0 0.0
    %38 = vmatpush1.msra.mxu0 0.0
    %39 = vmatprep.subr.mxu0 0.0
    %40 = vmatpush1.msra.mxu0 0.0
    %41 = vmatprep.subr.mxu0 0.0
    %42 = vmatpush1.msra.mxu0 0.0
    %43 = vmatprep.subr.mxu0 0.0
    %44 = vmatpush1.msra.mxu0 0.0
    %45 = vmatprep.subr.mxu0 0.0
    %46 = vmatpush1.msra.mxu0 0.0
    %47 = vmatprep.subr.mxu0 0.0
    %48 = vmatpush1.msra.mxu0 0.0
    %49 = vmatprep.subr.mxu0 0.0
    %50 = vmatpush1.msra.mxu0 0.0
    %51 = vmatprep.subr.mxu0 0.0
    %52 = vmatpush1.msra.mxu0 0.0
    %53 = vmatprep.subr.mxu0 0.0
    %54 = vmatpush1.msra.mxu0 0.0
    %55 = vmatprep.subr.mxu0 0.0
    %56 = vmatpush1.msra.mxu0 0.0
    %57 = vmatprep.subr.mxu0 0.0
    %58 = vmatpush1.msra.mxu0 0.0
    %59 = vmatprep.subr.mxu0 0.0
    %60 = vmatpush1.msra.mxu0 0.0
    %61 = vmatprep.subr.mxu0 0.0
    %62 = vmatpush1.msra.mxu0 0.0
    %63 = vmatprep.subr.mxu0 0.0
    %64 = vmatpush1.msra.mxu0 0.0
    %65 = vmatprep.subr.mxu0 0.0
    %66 = vmatpush1.msra.mxu0 0.0
    %67 = vmatprep.subr.mxu0 0.0
    %68 = vmatpush1.msra.mxu0 0.0
    %69 = vmatprep.subr.mxu0 0.0
    %70 = vmatpush1.msra.mxu0 0.0
    %71 = vmatprep.subr.mxu0 0.0
    %72 = vmatpush1.msra.mxu0 0.0
    %73 = vmatprep.subr.mxu0 0.0
    %74 = vmatpush1.msra.mxu0 0.0
    %75 = vmatprep.subr.mxu0 0.0
    %76 = vmatpush1.msra.mxu0 0.0
    %77 = vmatprep.subr.mxu0 0.0
    %78 = vmatpush1.msra.mxu0 0.0
    %79 = vmatprep.subr.mxu0 0.0
    %80 = vmatpush1.msra.mxu0 0.0
    %81 = vmatprep.subr.mxu0 0.0
    %82 = vmatpush1.msra.mxu0 0.0
    %83 = vmatprep.subr.mxu0 0.0
    %84 = vmatpush1.msra.mxu0 0.0
    %85 = vmatprep.subr.mxu0 0.0
    %86 = vmatpush1.msra.mxu0 0.0
    %87 = vmatprep.subr.mxu0 0.0
    %88 = vmatpush1.msra.mxu0 0.0
    %89 = vmatprep.subr.mxu0 0.0
    %90 = vmatpush1.msra.mxu0 0.0
    %91 = vmatprep.subr.mxu0 0.0
    %92 = vmatpush1.msra.mxu0 0.0
    %93 = vmatprep.subr.mxu0 0.0
    %94 = vmatpush1.msra.mxu0 0.0
    %95 = vmatprep.mubr.f32.mxu0 0.0
    %96 = vmatmul.mubr.f32.gmra.mrb[0].mxu0 %v26
    %v97 = vpop.f32.mrb[0].mxu0
    %v98 = vadd.f32 0.0, %v97
    %v99 = vpop.f32.mrb[0].mxu0
    %100 = vmatprep.mubr.f32.mxu0 0.0
    %101 = vmatmul.mubr.f32.gmra.mrb[0].mxu0 %v29
    %v102 = vpop.f32.mrb[0].mxu0
    %v103 = vadd.f32 0.0, %v102
    %v104 = vpop.f32.mrb[0].mxu0
    %105 = vdwg.mxu0
    %v106 = vmax.f32 %v98, 0.0
    %v107 = vmax.f32 %v103, 0.0
    %108 = vst [vmem:[#allocation3] sm:$0xff] %v106
    %109 = vst [vmem:[#allocation3 + $0x8] sm:$0xff] %v107
    // Predicated region
    $region14: #{tpu_custom_call.1} parent=1 // pred_check
      _
    $region15: #{tpu_custom_call.1} parent=1 // pred_check_branch
      %111 = sbr.rel (0) target = $region17
    $region16: #{tpu_custom_call.1} parent=1 // pred_region
      %s113 = ssub.s32 256, 256
      %114 = vsyncadd [#allocation4], %s113
      %s115 = sshll.u32 [#allocation3], 4
      %s116 = int_to_ptr.vmem [resolvable:$true] %s115
      %121 = dma.vmem_to_hbm [thread:$0]  %s116, 256, %s3, [#allocation4], 128, 128, 8
    $region17: #{tpu_custom_call.1} parent=1 // pred_fallthru
      _
    // Predicated region
    $region18: #{tpu_custom_call.1} parent=1 // pred_check
      _
    $region19: #{tpu_custom_call.1} parent=1 // pred_check_branch
      %123 = sbr.rel (0) target = $region21
    $region20: #{tpu_custom_call.1} parent=1 // pred_region
      %124 = dma.done [#allocation4], 256
    $region21: #{tpu_custom_call.1} parent=1 // pred_fallthru
      _
    %125 = vsyncpa [#allocation4], 1

</llo_original>
